<compile_context>
chip_gen: v6e
topology: v6e:2x2x1
jax: 0.10.0
libtpu: 0.0.40
codegen_flags: <defaults>
</compile_context>

<pallas_src>
import functools
import math

import jax
import jax.numpy as jnp
from jax.experimental import pallas as pl
from jax.experimental.pallas import tpu as pltpu


def _rotary_kernel(hinv_ref, wfreq_ref, cos_ref, sin_ref, *, bh, start_h):
    # Output tile: (bh, W) with W = this_w * dim (lane-dense).
    # freqs[r, col] = (start_h + ih) * hinv[col] + wfreq[col]
    #   hinv[col]  = inv_freq[c]              if c <  dim/2 else 0
    #   wfreq[col] = (start_w + iw)*inv_freq  if c >= dim/2 else 0
    # with c = col % dim, iw = col // dim already folded into the two
    # wrapper-built rows — no integer div/mod or masks in the kernel.
    i = pl.program_id(0)
    row = jax.lax.broadcasted_iota(jnp.int32, (bh, 1), 0)
    ih = row + i * bh + start_h                       # global height index
    pos_h = ih.astype(jnp.float32)                    # (bh, 1)
    freqs = pos_h * hinv_ref[...] + wfreq_ref[...]    # (bh, W) via broadcasts
    cos_ref[...] = jnp.cos(freqs)
    sin_ref[...] = jnp.sin(freqs)


def rotary_forward(x, inv_freq, *, height_width=None,
                   extend_with_register_tokens=0, start_h=0, start_w=0):
    """Pallas equivalent of Rotary.forward.

    `augment=True` in the torch module draws random start_h/start_w at call
    time; here the caller passes them explicitly (default 0 == augment=False).
    Returns (cos, sin), each of shape (1, reg + this_h*this_w, 1, dim), f32.
    """
    if height_width is not None:
        this_h, this_w = height_width
    else:
        hw = x.shape[1]
        # Same silent perfect-square assumption as the torch module.
        this_h = this_w = int(math.isqrt(hw))

    half = inv_freq.shape[0]
    dim = 2 * half
    reg = int(extend_with_register_tokens)
    start_h = int(start_h)
    start_w = int(start_w)
    W = this_w * dim

    inv = inv_freq.astype(jnp.float32)                       # (half,)

    # Lane patterns, built once in the wrapper (tiny, (1, W) each):
    #   hinv_row : inv_freq on the height half of each token's channels,
    #              zeros on the width half, tiled over the this_w tokens.
    #   wfreq_row: full width-half frequencies (start_w+iw)*inv_freq,
    #              zeros on the height half.
    hinv_row = jnp.tile(jnp.concatenate([inv, jnp.zeros_like(inv)]), this_w)
    hinv_row = hinv_row.reshape(1, W)
    pos_w = (jnp.arange(this_w, dtype=jnp.float32) + start_w)[:, None]
    wfreq_row = jnp.concatenate(
        [jnp.zeros((this_w, half), jnp.float32), pos_w * inv[None, :]], axis=1
    ).reshape(1, W)

    # Height-row block: multiple of 8 (sublane tile) when possible, sized so
    # the grid has a handful of steps (pipelining + v7x megacore) without
    # paying per-step overhead for dozens of tiny blocks.
    bh = this_h
    if this_h % 8 == 0:
        bh = 8
        while (bh * 2 <= this_h and this_h % (bh * 2) == 0
               and this_h // (bh * 2) >= 4):
            bh *= 2

    kernel = functools.partial(_rotary_kernel, bh=bh, start_h=start_h)
    n_elems = this_h * W
    cos2d, sin2d = pl.pallas_call(
        kernel,
        out_shape=(jax.ShapeDtypeStruct((this_h, W), jnp.float32),
                   jax.ShapeDtypeStruct((this_h, W), jnp.float32)),
        grid=(this_h // bh,),
        in_specs=[pl.BlockSpec((1, W), lambda i: (0, 0)),
                  pl.BlockSpec((1, W), lambda i: (0, 0))],
        out_specs=(pl.BlockSpec((bh, W), lambda i: (i, 0)),
                   pl.BlockSpec((bh, W), lambda i: (i, 0))),
        compiler_params=pltpu.CompilerParams(
            dimension_semantics=("parallel",)),
        cost_estimate=pl.CostEstimate(
            flops=2 * n_elems,
            transcendentals=2 * n_elems,
            bytes_accessed=2 * n_elems * 4 + 2 * W * 4),
    )(hinv_row, wfreq_row)

    # Row-major reinterpretation back to the per-token layout (cheap reshape).
    cos = cos2d.reshape(this_h * this_w, dim)
    sin = sin2d.reshape(this_h * this_w, dim)

    # Register-token rows are constants; prepend them outside the kernel.
    if reg > 0:
        cos = jnp.concatenate([jnp.ones((reg, dim), jnp.float32), cos], axis=0)
        sin = jnp.concatenate([jnp.zeros((reg, dim), jnp.float32), sin], axis=0)

    return cos[None, :, None, :], sin[None, :, None, :]


def _reference(x, inv_freq, *, height_width=None, extend_with_register_tokens=0,
               start_h=0, start_w=0, h=128, w=128):
    """Pure-JAX port of the torch module, for correctness checking."""
    t_h = jnp.arange(h, dtype=jnp.float32)
    t_w = jnp.arange(w, dtype=jnp.float32)
    freqs_h = jnp.outer(t_h, inv_freq)[:, None, :]
    freqs_w = jnp.outer(t_w, inv_freq)[None, :, :]
    freqs_h = jnp.tile(freqs_h, (1, w, 1))
    freqs_w = jnp.tile(freqs_w, (h, 1, 1))
    freqs_hw = jnp.concatenate([freqs_h, freqs_w], axis=2)
    cos_buf = jnp.cos(freqs_hw)
    sin_buf = jnp.sin(freqs_hw)

    if height_width is not None:
        this_h, this_w = height_width
    else:
        hw = x.shape[1]
        this_h = this_w = int(math.isqrt(hw))

    cos = cos_buf[start_h:start_h + this_h,
                  start_w:start_w + this_w].reshape(this_h * this_w, -1)
    sin = sin_buf[start_h:start_h + this_h,
                  start_w:start_w + this_w].reshape(this_h * this_w, -1)
    reg = extend_with_register_tokens
    if reg > 0:
        cos = jnp.concatenate([jnp.ones((reg, cos.shape[1])), cos], 0)
        sin = jnp.concatenate([jnp.zeros((reg, sin.shape[1])), sin], 0)
    return cos[None, :, None, :], sin[None, :, None, :]


if __name__ == "__main__":
    # Module params (deterministic, from __init__): dim=32, base=100, h=w=128.
    dim = 32
    base = 100.0
    inv_freq = 1.0 / base ** (jnp.arange(0, dim, 2, dtype=jnp.float32) / dim)

    # Input: batch=2, 64 spatial tokens (8x8), 4 heads, head_dim=32.
    key = jax.random.PRNGKey(0)
    x = jax.random.normal(key, (2, 64, 4, dim), dtype=jnp.float32)

    # Case 1: square token grid inferred from x.shape[1], 4 register tokens.
    reg = 4
    cos, sin = rotary_forward(x, inv_freq, extend_with_register_tokens=reg)
    cos = jax.block_until_ready(cos)
    sin = jax.block_until_ready(sin)
    cos_ref, sin_ref = _reference(x, inv_freq, extend_with_register_tokens=reg)
    assert cos.shape == (1, reg + 64, 1, dim), cos.shape
    assert sin.shape == (1, reg + 64, 1, dim), sin.shape
    assert jnp.allclose(cos, cos_ref, atol=1e-5), "cos mismatch (case 1)"
    assert jnp.allclose(sin, sin_ref, atol=1e-5), "sin mismatch (case 1)"

    # Case 2: explicit rectangular height_width + nonzero crop offsets
    # (corresponds to augment=True with a fixed random draw).
    hw_shape = (4, 16)
    cos2, sin2 = rotary_forward(x, inv_freq, height_width=hw_shape,
                                start_h=3, start_w=5)
    cos2 = jax.block_until_ready(cos2)
    sin2 = jax.block_until_ready(sin2)
    cos2_ref, sin2_ref = _reference(x, inv_freq, height_width=hw_shape,
                                    start_h=3, start_w=5)
    assert cos2.shape == (1, 64, 1, dim), cos2.shape
    assert jnp.allclose(cos2, cos2_ref, atol=1e-5), "cos mismatch (case 2)"
    assert jnp.allclose(sin2, sin2_ref, atol=1e-5), "sin mismatch (case 2)"

    print("KERNEL_OK")
</pallas_src>

<mosaic_0001>
module attributes {stable_mosaic.version = 11 : i64} {
  func.func @_rotary_kernel(%arg0: i32, %arg1: memref<1x256xf32, #tpu.memory_space<vmem>>, %arg2: memref<1x256xf32, #tpu.memory_space<vmem>>, %arg3: memref<8x256xf32, #tpu.memory_space<vmem>>, %arg4: memref<8x256xf32, #tpu.memory_space<vmem>>) attributes {dimension_semantics = [#tpu.dimension_semantics<parallel>], iteration_bounds = array<i64: 1>, scalar_prefetch = 0 : i64, scratch_operands = 0 : i64, tpu.core_type = #tpu.core_type<tc>, window_params = [{pipeline_mode = #tpu.pipeline_mode<synchronous>, transform_indices = @transform_0, window_bounds = array<i64: 1, 256>}, {pipeline_mode = #tpu.pipeline_mode<synchronous>, transform_indices = @transform_1, window_bounds = array<i64: 1, 256>}, {transform_indices = @transform_2, window_bounds = array<i64: 8, 256>}, {transform_indices = @transform_3, window_bounds = array<i64: 8, 256>}]} {
    %0 = tpu.iota {dimensions = array<i32: 0>} : vector<8x1xi32>
    %c8_i32 = arith.constant 8 : i32
    %1 = arith.muli %arg0, %c8_i32 : i32
    %2 = vector.broadcast %1 : i32 to vector<8x1xi32>
    %3 = arith.addi %0, %2 : vector<8x1xi32>
    %c0_i32 = arith.constant 0 : i32
    %4 = vector.broadcast %c0_i32 : i32 to vector<8x1xi32>
    %5 = arith.addi %3, %4 : vector<8x1xi32>
    %6 = arith.sitofp %5 : vector<8x1xi32> to vector<8x1xf32>
    %c0 = arith.constant 0 : index
    %c0_0 = arith.constant 0 : index
    %7 = vector.load %arg1[%c0, %c0_0] : memref<1x256xf32, #tpu.memory_space<vmem>>, vector<1x256xf32>
    %8 = vector.broadcast %6 : vector<8x1xf32> to vector<8x256xf32>
    %9 = vector.broadcast %7 : vector<1x256xf32> to vector<8x256xf32>
    %10 = arith.mulf %8, %9 : vector<8x256xf32>
    %c0_1 = arith.constant 0 : index
    %c0_2 = arith.constant 0 : index
    %11 = vector.load %arg2[%c0_1, %c0_2] : memref<1x256xf32, #tpu.memory_space<vmem>>, vector<1x256xf32>
    %12 = vector.broadcast %11 : vector<1x256xf32> to vector<8x256xf32>
    %13 = arith.addf %10, %12 : vector<8x256xf32>
    %14 = math.cos %13 : vector<8x256xf32>
    %c0_3 = arith.constant 0 : index
    %c0_4 = arith.constant 0 : index
    %15 = vector.load %arg3[%c0_3, %c0_4] : memref<8x256xf32, #tpu.memory_space<vmem>>, vector<8x256xf32>
    tpu.vector_store %arg3[%c0_3, %c0_4], %14 {strides = array<i32>} : memref<8x256xf32, #tpu.memory_space<vmem>>, vector<8x256xf32>,
    %16 = math.sin %13 : vector<8x256xf32>
    %c0_5 = arith.constant 0 : index
    %c0_6 = arith.constant 0 : index
    %17 = vector.load %arg4[%c0_5, %c0_6] : memref<8x256xf32, #tpu.memory_space<vmem>>, vector<8x256xf32>
    tpu.vector_store %arg4[%c0_5, %c0_6], %16 {strides = array<i32>} : memref<8x256xf32, #tpu.memory_space<vmem>>, vector<8x256xf32>,
    return
  }
  func.func @transform_0(%arg0: i32) -> (i32, i32) {
    %c0_i32 = arith.constant 0 : i32
    %c0_i32_0 = arith.constant 0 : i32
    %c0_i32_1 = arith.constant 0 : i32
    return %c0_i32, %c0_i32_0 : i32, i32
  }
  func.func @transform_1(%arg0: i32) -> (i32, i32) {
    %c0_i32 = arith.constant 0 : i32
    %c0_i32_0 = arith.constant 0 : i32
    %c0_i32_1 = arith.constant 0 : i32
    return %c0_i32, %c0_i32_0 : i32, i32
  }
  func.func @transform_2(%arg0: i32) -> (i32, i32) {
    %c0_i32 = arith.constant 0 : i32
    %c0_i32_0 = arith.constant 0 : i32
    return %arg0, %c0_i32 : i32, i32
  }
  func.func @transform_3(%arg0: i32) -> (i32, i32) {
    %c0_i32 = arith.constant 0 : i32
    %c0_i32_0 = arith.constant 0 : i32
    return %arg0, %c0_i32 : i32, i32
  }
}

</mosaic_0001>

<llo_original>
// kernel: tpu_custom_call.1
$region0: #{tpu_custom_call.1}
  #allocation0 [shape = 'u32[]', space=smem, size = 0x4, offset = 0x4, fixed_abs, tag = 'smem constant byte address 0x4 - core index']
  #allocation1 [shape = 'u32[144,128]{1,0:T(1,128)}', space=vmem, size = 0x12000, scoped, tag = 'internal scratch']
  %s0 = inlined_call_operand.hbm [shape: f32[1,256], index: 0, kind: input, shape index: {}]
  %s1 = inlined_call_operand.hbm [shape: f32[1,256], index: 1, kind: input, shape index: {}]
  %s2 = inlined_call_operand.hbm [shape: f32[8,256], index: 2, kind: output, shape index: {0}]
  %s3 = inlined_call_operand.hbm [shape: f32[8,256], index: 3, kind: output, shape index: {1}]
  %4 = xla_tuple %s2, %s3
  %s5 = sld [smem:[#allocation0]]
  $region34: #{tpu_custom_call.1} parent=0
    _
  %s7 = ssub.s32 1, %s5
  %s8 = scalar_select 0, %s7, %s5
  $region1: #{tpu_custom_call.1} parent=0
    #allocation2 [shape = 'u8[1024]{0}', space=vmem, size = 0x400, scoped, tag = 'input window, operand 0, single buffered']
    #allocation3 [shape = 's32[1]{0}', space=sflag, size = 0x4, scoped, tag = 'scoped memory for tpu_custom_call.1']
    #allocation4 [shape = 's32[1]{0}', space=sflag, size = 0x4, scoped, tag = 'scoped memory for tpu_custom_call.1']
    #allocation5 [shape = 'u8[1024]{0}', space=vmem, size = 0x400, scoped, tag = 'input window, operand 1, single buffered']
    #allocation6 [shape = 's32[1]{0}', space=sflag, size = 0x4, scoped, tag = 'scoped memory for tpu_custom_call.1']
    #allocation7 [shape = 'u8[8192]{0}', space=vmem, size = 0x2000, scoped, tag = 'output window, operand 0, single buffered']
    #allocation8 [shape = 'u8[8192]{0}', space=vmem, size = 0x2000, scoped, tag = 'output window, operand 1, single buffered']
    #allocation9 [shape = 's32[1]{0}', space=sflag, size = 0x4, scoped, tag = 'scoped memory for tpu_custom_call.1']
    %9 = vsyncpa [#allocation3], 0
    %10 = vsyncpa [#allocation6], 0
    %11 = vsyncpa [#allocation4], 0
    %12 = vsyncpa [#allocation9], 0
    // Predicated region
    $region2: #{tpu_custom_call.1} parent=1 // pred_check
      _
    $region3: #{tpu_custom_call.1} parent=1 // pred_check_branch
      %14 = sbr.rel (0) target = $region5
    $region4: #{tpu_custom_call.1} parent=1 // pred_region
      %s16 = ssub.s32 32, 32
      %17 = vsyncadd [#allocation3], %s16
      %s19 = sshll.u32 [#allocation2], 4
      %s20 = int_to_ptr.vmem [resolvable:$true] %s19
      %22 = dma.hbm_to_vmem [thread:$0]  %s0, 32, %s20, [#allocation3]
    $region5: #{tpu_custom_call.1} parent=1 // pred_fallthru
      _
    // Predicated region
    $region6: #{tpu_custom_call.1} parent=1 // pred_check
      _
    $region7: #{tpu_custom_call.1} parent=1 // pred_check_branch
      %24 = sbr.rel (0) target = $region9
    $region8: #{tpu_custom_call.1} parent=1 // pred_region
      %s26 = ssub.s32 32, 32
      %27 = vsyncadd [#allocation6], %s26
      %s29 = sshll.u32 [#allocation5], 4
      %s30 = int_to_ptr.vmem [resolvable:$true] %s29
      %32 = dma.hbm_to_vmem [thread:$0]  %s1, 32, %s30, [#allocation6]
    $region9: #{tpu_custom_call.1} parent=1 // pred_fallthru
      _
    // Predicated region
    $region10: #{tpu_custom_call.1} parent=1 // pred_check
      _
    $region11: #{tpu_custom_call.1} parent=1 // pred_check_branch
      %34 = sbr.rel (0) target = $region13
    $region12: #{tpu_custom_call.1} parent=1 // pred_region
      %35 = dma.done [#allocation3], 32
    $region13: #{tpu_custom_call.1} parent=1 // pred_fallthru
      _
    // Predicated region
    $region14: #{tpu_custom_call.1} parent=1 // pred_check
      _
    $region15: #{tpu_custom_call.1} parent=1 // pred_check_branch
      %37 = sbr.rel (0) target = $region17
    $region16: #{tpu_custom_call.1} parent=1 // pred_region
      %38 = dma.done [#allocation6], 32
    $region17: #{tpu_custom_call.1} parent=1 // pred_fallthru
      _
    %v39 = vlaneseq
    %v40 = vshrl.u32 %v39, 7
    %s41 = smul.u32 0, 8
    %v42 = vstv %s41
    %v43 = vadd.s32 %v40, %v42
    %v44 = vcvt.s32.f32 %v43
    %v45 = vld [vmem:[#allocation2] sm:$0x3]
    %v47 = vlaneseq
    %v48 = vshrl.u32 %v47, 7
    %v49 = vsub.s32 0, %v48
    %v50 = vrot.slane %v45, %v49
    %v51 = vlaneseq
    %v52 = vshrl.u32 %v51, 7
    %v53 = vsub.s32 1, %v52
    %v54 = vrot.slane %v45, %v53
    %v57 = vmul.f32 %v44, %v50
    %v58 = vmul.f32 %v44, %v54
    %v59 = vld [vmem:[#allocation5] sm:$0x3]
    %v61 = vlaneseq
    %v62 = vshrl.u32 %v61, 7
    %v63 = vsub.s32 0, %v62
    %v64 = vrot.slane %v59, %v63
    %v65 = vlaneseq
    %v66 = vshrl.u32 %v65, 7
    %v67 = vsub.s32 1, %v66
    %v68 = vrot.slane %v59, %v67
    %v71 = vadd.f32 %v57, %v64
    %v72 = vadd.f32 %v58, %v68
    %v73 = vand.u32 2147483647, %v71
    %vm74 = vcmp.le.f32.partialorder %v73, 0.7853982
    %vm75 = vcmp.lt.s32.totalorder %v71, 0
    %v76 = vand.u32 %v71, 2139095040
    %v77 = vshrl.u32 %v76, 23
    %v78 = vsub.s32 %v77, 127
    %v79 = vand.u32 2147483647, %v71
    %v80 = vand.u32 %v79, 8388607
    %v81 = vor.u32 %v80, 8388608
    %v82 = vsub.s32 0, %v81
    %v83 = vadd.s32 %v78, 1
    %vm84 = vcmp.gt.s32.totalorder %v83, 0
    %v85 = vsel %vm84, %v83, 0
    %v86 = vshrl.u32 %v85, 5
    %v87 = vand.u32 %v85, 31
    %v88 = vsub.s32 32, %v87
    %v89 = vshrl.u32 683565275, %v88
    %v90 = vshll.u32 683565275, %v87
    %v91 = vshrl.u32 2475754826, %v88
    %v92 = vor.u32 %v90, %v91
    %v93 = vshll.u32 2475754826, %v87
    %v94 = vshrl.u32 2131351028, %v88
    %v95 = vor.u32 %v93, %v94
    %v96 = vshll.u32 2131351028, %v87
    %v97 = vshrl.u32 2102212464, %v88
    %v98 = vor.u32 %v96, %v97
    %v99 = vshll.u32 2102212464, %v87
    %v100 = vshrl.u32 920167782, %v88
    %v101 = vor.u32 %v99, %v100
    %v102 = vshll.u32 920167782, %v87
    %v103 = vshrl.u32 1326507024, %v88
    %v104 = vor.u32 %v102, %v103
    %vm105 = vcmp.lt.s32.totalorder %v86, 1
    %vm106 = vcmp.lt.s32.totalorder %v86, 2
    %vm107 = vcmp.lt.s32.totalorder %v86, 3
    %vm108 = vcmp.lt.s32.totalorder %v86, 4
    %v109 = vsel %vm105, %v89, %v92
    %v110 = vsel %vm108, %v98, 2102212464
    %v111 = vsel %vm107, %v95, %v110
    %v112 = vsel %vm106, %v109, %v111
    %v113 = vsel %vm105, %v92, %v95
    %v114 = vsel %vm108, %v101, 920167782
    %v115 = vsel %vm107, %v98, %v114
    %v116 = vsel %vm106, %v113, %v115
    %v117 = vsel %vm105, %v95, %v98
    %v118 = vsel %vm108, %v104, 1326507024
    %v119 = vsel %vm107, %v101, %v118
    %v120 = vsel %vm106, %v117, %v119
    %v121 = vshll.u32 %v81, 8
    %v122 = vmul.u32.u64.compose %v121, %v120
    %v123 = vextract.low.u32 %v122
    %v124 = vextract.high.u32 %v122
    %v125 = vmul.u32.u64.compose %v121, %v116
    %v126 = vextract.low.u32 %v125
    %v127 = vextract.high.u32 %v125
    %v128 = vmul.u32 %v121, %v112
    %v129 = vadd.s32 %v124, %v126
    %vm130 = vc.u32 %v124, %v126
    %v131 = vadd.s32 %v127, 1
    %v132 = vsel %vm130, %v131, %v127
    %v133 = vadd.s32 %v128, %v132
    %v134 = vadd.s32 %v133, 536870912
    %v135 = vshrl.u32 %v134, 30
    %v136 = vshll.u32 %v135, 30
    %v137 = vsub.s32 %v133, %v136
    %vm138 = vcmp.lt.s32.totalorder %v137, 0
    %v139 = vsub.s32 0, %v137
    %v140 = vsel %vm138, %v139, %v137
    %v141 = vclz %v140
    %v142 = vsub.s32 %v141, 2
    %vm143 = vcmp.gt.s32.totalorder 0, %v142
    %v144 = vsel %vm143, 0, %v142
    %v145 = vsub.s32 32, %v144
    %v146 = vshll.u32 %v137, %v144
    %v147 = vshrl.u32 %v129, %v145
    %v148 = vor.u32 %v146, %v147
    %v149 = vsub.s32 4294967266, %v144
    %v150 = vadd.s32 %v149, 127
    %v151 = vshll.u32 %v150, 23
    %v152 = vor.u32 4788187, %v151
    %v153 = vand.u32 2147483647, %v152
    %v155 = vcvt.s32.f32 %v148
    %v156 = vmul.f32 %v155, %v153
    %v157 = vxor.u32 %v156, 2147483648
    %v158 = vsel %vm75, %v157, %v156
    %v159 = vsub.s32 4, %v135
    %v160 = vsel %vm75, %v159, %v135
    %v161 = vsel %vm74, %v71, %v158
    %v162 = vsel %vm74, 0, %v160
    %v163 = vcosq.f32.pop %v161
    %v164 = vsinq.f32.pop %v161
    %vm165 = vweird.f32 %v71
    %v166 = vand.u32 %v162, 3
    %vm167 = vcmp.lt.s32.totalorder %v166, 2
    %vm168 = vcmp.eq.s32.totalorder %v166, 0
    %v169 = vxor.u32 %v164, 2147483648
    %v170 = vsel %vm168, %v163, %v169
    %vm171 = vcmp.eq.s32.totalorder %v166, 2
    %v172 = vxor.u32 %v163, 2147483648
    %v173 = vsel %vm171, %v172, %v164
    %v174 = vsel %vm167, %v170, %v173
    %v175 = vsel %vm165, nan, %v174
    %v176 = vand.u32 2147483647, %v72
    %vm177 = vcmp.le.f32.partialorder %v176, 0.7853982
    %vm178 = vcmp.lt.s32.totalorder %v72, 0
    %v179 = vand.u32 %v72, 2139095040
    %v180 = vshrl.u32 %v179, 23
    %v181 = vsub.s32 %v180, 127
    %v182 = vand.u32 2147483647, %v72
    %v183 = vand.u32 %v182, 8388607
    %v184 = vor.u32 %v183, 8388608
    %v185 = vsub.s32 0, %v184
    %v186 = vadd.s32 %v181, 1
    %vm187 = vcmp.gt.s32.totalorder %v186, 0
    %v188 = vsel %vm187, %v186, 0
    %v189 = vshrl.u32 %v188, 5
    %v190 = vand.u32 %v188, 31
    %v191 = vsub.s32 32, %v190
    %v192 = vshrl.u32 683565275, %v191
    %v193 = vshll.u32 683565275, %v190
    %v194 = vshrl.u32 2475754826, %v191
    %v195 = vor.u32 %v193, %v194
    %v196 = vshll.u32 2475754826, %v190
    %v197 = vshrl.u32 2131351028, %v191
    %v198 = vor.u32 %v196, %v197
    %v199 = vshll.u32 2131351028, %v190
    %v200 = vshrl.u32 2102212464, %v191
    %v201 = vor.u32 %v199, %v200
    %v202 = vshll.u32 2102212464, %v190
    %v203 = vshrl.u32 920167782, %v191
    %v204 = vor.u32 %v202, %v203
    %v205 = vshll.u32 920167782, %v190
    %v206 = vshrl.u32 1326507024, %v191
    %v207 = vor.u32 %v205, %v206
    %vm208 = vcmp.lt.s32.totalorder %v189, 1
    %vm209 = vcmp.lt.s32.totalorder %v189, 2
    %vm210 = vcmp.lt.s32.totalorder %v189, 3
    %vm211 = vcmp.lt.s32.totalorder %v189, 4
    %v212 = vsel %vm208, %v192, %v195
    %v213 = vsel %vm211, %v201, 2102212464
    %v214 = vsel %vm210, %v198, %v213
    %v215 = vsel %vm209, %v212, %v214
    %v216 = vsel %vm208, %v195, %v198
    %v217 = vsel %vm211, %v204, 920167782
    %v218 = vsel %vm210, %v201, %v217
    %v219 = vsel %vm209, %v216, %v218
    %v220 = vsel %vm208, %v198, %v201
    %v221 = vsel %vm211, %v207, 1326507024
    %v222 = vsel %vm210, %v204, %v221
    %v223 = vsel %vm209, %v220, %v222
    %v224 = vshll.u32 %v184, 8
    %v225 = vmul.u32.u64.compose %v224, %v223
    %v226 = vextract.low.u32 %v225
    %v227 = vextract.high.u32 %v225
    %v228 = vmul.u32.u64.compose %v224, %v219
    %v229 = vextract.low.u32 %v228
    %v230 = vextract.high.u32 %v228
    %v231 = vmul.u32 %v224, %v215
    %v232 = vadd.s32 %v227, %v229
    %vm233 = vc.u32 %v227, %v229
    %v234 = vadd.s32 %v230, 1
    %v235 = vsel %vm233, %v234, %v230
    %v236 = vadd.s32 %v231, %v235
    %v237 = vadd.s32 %v236, 536870912
    %v238 = vshrl.u32 %v237, 30
    %v239 = vshll.u32 %v238, 30
    %v240 = vsub.s32 %v236, %v239
    %vm241 = vcmp.lt.s32.totalorder %v240, 0
    %v242 = vsub.s32 0, %v240
    %v243 = vsel %vm241, %v242, %v240
    %v244 = vclz %v243
    %v245 = vsub.s32 %v244, 2
    %vm246 = vcmp.gt.s32.totalorder 0, %v245
    %v247 = vsel %vm246, 0, %v245
    %v248 = vsub.s32 32, %v247
    %v249 = vshll.u32 %v240, %v247
    %v250 = vshrl.u32 %v232, %v248
    %v251 = vor.u32 %v249, %v250
    %v252 = vsub.s32 4294967266, %v247
    %v253 = vadd.s32 %v252, 127
    %v254 = vshll.u32 %v253, 23
    %v255 = vor.u32 4788187, %v254
    %v256 = vand.u32 2147483647, %v255
    %v258 = vcvt.s32.f32 %v251
    %v259 = vmul.f32 %v258, %v256
    %v260 = vxor.u32 %v259, 2147483648
    %v261 = vsel %vm178, %v260, %v259
    %v262 = vsub.s32 4, %v238
    %v263 = vsel %vm178, %v262, %v238
    %v264 = vsel %vm177, %v72, %v261
    %v265 = vsel %vm177, 0, %v263
    %v266 = vcosq.f32.pop %v264
    %v267 = vsinq.f32.pop %v264
    %vm268 = vweird.f32 %v72
    %v269 = vand.u32 %v265, 3
    %vm270 = vcmp.lt.s32.totalorder %v269, 2
    %vm271 = vcmp.eq.s32.totalorder %v269, 0
    %v272 = vxor.u32 %v267, 2147483648
    %v273 = vsel %vm271, %v266, %v272
    %vm274 = vcmp.eq.s32.totalorder %v269, 2
    %v275 = vxor.u32 %v266, 2147483648
    %v276 = vsel %vm274, %v275, %v267
    %v277 = vsel %vm270, %v273, %v276
    %v278 = vsel %vm268, nan, %v277
    %279 = vst [vmem:[#allocation7] sm:$0xff] %v175
    %280 = vst [vmem:[#allocation7 + $0x8] sm:$0xff] %v278
    %v281 = vand.u32 2147483647, %v71
    %vm282 = vcmp.le.f32.partialorder %v281, 0.7853982
    %vm283 = vcmp.lt.s32.totalorder %v71, 0
    %v284 = vand.u32 %v71, 2139095040
    %v285 = vshrl.u32 %v284, 23
    %v286 = vsub.s32 %v285, 127
    %v287 = vand.u32 2147483647, %v71
    %v288 = vand.u32 %v287, 8388607
    %v289 = vor.u32 %v288, 8388608
    %v290 = vsub.s32 0, %v289
    %v291 = vadd.s32 %v286, 1
    %vm292 = vcmp.gt.s32.totalorder %v291, 0
    %v293 = vsel %vm292, %v291, 0
    %v294 = vshrl.u32 %v293, 5
    %v295 = vand.u32 %v293, 31
    %v296 = vsub.s32 32, %v295
    %v297 = vshrl.u32 683565275, %v296
    %v298 = vshll.u32 683565275, %v295
    %v299 = vshrl.u32 2475754826, %v296
    %v300 = vor.u32 %v298, %v299
    %v301 = vshll.u32 2475754826, %v295
    %v302 = vshrl.u32 2131351028, %v296
    %v303 = vor.u32 %v301, %v302
    %v304 = vshll.u32 2131351028, %v295
    %v305 = vshrl.u32 2102212464, %v296
    %v306 = vor.u32 %v304, %v305
    %v307 = vshll.u32 2102212464, %v295
    %v308 = vshrl.u32 920167782, %v296
    %v309 = vor.u32 %v307, %v308
    %v310 = vshll.u32 920167782, %v295
    %v311 = vshrl.u32 1326507024, %v296
    %v312 = vor.u32 %v310, %v311
    %vm313 = vcmp.lt.s32.totalorder %v294, 1
    %vm314 = vcmp.lt.s32.totalorder %v294, 2
    %vm315 = vcmp.lt.s32.totalorder %v294, 3
    %vm316 = vcmp.lt.s32.totalorder %v294, 4
    %v317 = vsel %vm313, %v297, %v300
    %v318 = vsel %vm316, %v306, 2102212464
    %v319 = vsel %vm315, %v303, %v318
    %v320 = vsel %vm314, %v317, %v319
    %v321 = vsel %vm313, %v300, %v303
    %v322 = vsel %vm316, %v309, 920167782
    %v323 = vsel %vm315, %v306, %v322
    %v324 = vsel %vm314, %v321, %v323
    %v325 = vsel %vm313, %v303, %v306
    %v326 = vsel %vm316, %v312, 1326507024
    %v327 = vsel %vm315, %v309, %v326
    %v328 = vsel %vm314, %v325, %v327
    %v329 = vshll.u32 %v289, 8
    %v330 = vmul.u32.u64.compose %v329, %v328
    %v331 = vextract.low.u32 %v330
    %v332 = vextract.high.u32 %v330
    %v333 = vmul.u32.u64.compose %v329, %v324
    %v334 = vextract.low.u32 %v333
    %v335 = vextract.high.u32 %v333
    %v336 = vmul.u32 %v329, %v320
    %v337 = vadd.s32 %v332, %v334
    %vm338 = vc.u32 %v332, %v334
    %v339 = vadd.s32 %v335, 1
    %v340 = vsel %vm338, %v339, %v335
    %v341 = vadd.s32 %v336, %v340
    %v342 = vadd.s32 %v341, 536870912
    %v343 = vshrl.u32 %v342, 30
    %v344 = vshll.u32 %v343, 30
    %v345 = vsub.s32 %v341, %v344
    %vm346 = vcmp.lt.s32.totalorder %v345, 0
    %v347 = vsub.s32 0, %v345
    %v348 = vsel %vm346, %v347, %v345
    %v349 = vclz %v348
    %v350 = vsub.s32 %v349, 2
    %vm351 = vcmp.gt.s32.totalorder 0, %v350
    %v352 = vsel %vm351, 0, %v350
    %v353 = vsub.s32 32, %v352
    %v354 = vshll.u32 %v345, %v352
    %v355 = vshrl.u32 %v337, %v353
    %v356 = vor.u32 %v354, %v355
    %v357 = vsub.s32 4294967266, %v352
    %v358 = vadd.s32 %v357, 127
    %v359 = vshll.u32 %v358, 23
    %v360 = vor.u32 4788187, %v359
    %v361 = vand.u32 2147483647, %v360
    %v363 = vcvt.s32.f32 %v356
    %v364 = vmul.f32 %v363, %v361
    %v365 = vxor.u32 %v364, 2147483648
    %v366 = vsel %vm283, %v365, %v364
    %v367 = vsub.s32 4, %v343
    %v368 = vsel %vm283, %v367, %v343
    %v369 = vsel %vm282, %v71, %v366
    %v370 = vsel %vm282, 0, %v368
    %v371 = vcosq.f32.pop %v369
    %v372 = vsinq.f32.pop %v369
    %vm373 = vweird.f32 %v71
    %v374 = vadd.s32 %v370, 3
    %v375 = vand.u32 %v374, 3
    %vm376 = vcmp.lt.s32.totalorder %v375, 2
    %vm377 = vcmp.eq.s32.totalorder %v375, 0
    %v378 = vxor.u32 %v372, 2147483648
    %v379 = vsel %vm377, %v371, %v378
    %vm380 = vcmp.eq.s32.totalorder %v375, 2
    %v381 = vxor.u32 %v371, 2147483648
    %v382 = vsel %vm380, %v381, %v372
    %v383 = vsel %vm376, %v379, %v382
    %v384 = vsel %vm373, nan, %v383
    %v385 = vand.u32 2147483647, %v72
    %vm386 = vcmp.le.f32.partialorder %v385, 0.7853982
    %vm387 = vcmp.lt.s32.totalorder %v72, 0
    %v388 = vand.u32 %v72, 2139095040
    %v389 = vshrl.u32 %v388, 23
    %v390 = vsub.s32 %v389, 127
    %v391 = vand.u32 2147483647, %v72
    %v392 = vand.u32 %v391, 8388607
    %v393 = vor.u32 %v392, 8388608
    %v394 = vsub.s32 0, %v393
    %v395 = vadd.s32 %v390, 1
    %vm396 = vcmp.gt.s32.totalorder %v395, 0
    %v397 = vsel %vm396, %v395, 0
    %v398 = vshrl.u32 %v397, 5
    %v399 = vand.u32 %v397, 31
    %v400 = vsub.s32 32, %v399
    %v401 = vshrl.u32 683565275, %v400
    %v402 = vshll.u32 683565275, %v399
    %v403 = vshrl.u32 2475754826, %v400
    %v404 = vor.u32 %v402, %v403
    %v405 = vshll.u32 2475754826, %v399
    %v406 = vshrl.u32 2131351028, %v400
    %v407 = vor.u32 %v405, %v406
    %v408 = vshll.u32 2131351028, %v399
    %v409 = vshrl.u32 2102212464, %v400
    %v410 = vor.u32 %v408, %v409
    %v411 = vshll.u32 2102212464, %v399
    %v412 = vshrl.u32 920167782, %v400
    %v413 = vor.u32 %v411, %v412
    %v414 = vshll.u32 920167782, %v399
    %v415 = vshrl.u32 1326507024, %v400
    %v416 = vor.u32 %v414, %v415
    %vm417 = vcmp.lt.s32.totalorder %v398, 1
    %vm418 = vcmp.lt.s32.totalorder %v398, 2
    %vm419 = vcmp.lt.s32.totalorder %v398, 3
    %vm420 = vcmp.lt.s32.totalorder %v398, 4
    %v421 = vsel %vm417, %v401, %v404
    %v422 = vsel %vm420, %v410, 2102212464
    %v423 = vsel %vm419, %v407, %v422
    %v424 = vsel %vm418, %v421, %v423
    %v425 = vsel %vm417, %v404, %v407
    %v426 = vsel %vm420, %v413, 920167782
    %v427 = vsel %vm419, %v410, %v426
    %v428 = vsel %vm418, %v425, %v427
    %v429 = vsel %vm417, %v407, %v410
    %v430 = vsel %vm420, %v416, 1326507024
    %v431 = vsel %vm419, %v413, %v430
    %v432 = vsel %vm418, %v429, %v431
    %v433 = vshll.u32 %v393, 8
    %v434 = vmul.u32.u64.compose %v433, %v432
    %v435 = vextract.low.u32 %v434
    %v436 = vextract.high.u32 %v434
    %v437 = vmul.u32.u64.compose %v433, %v428
    %v438 = vextract.low.u32 %v437
    %v439 = vextract.high.u32 %v437
    %v440 = vmul.u32 %v433, %v424
    %v441 = vadd.s32 %v436, %v438
    %vm442 = vc.u32 %v436, %v438
    %v443 = vadd.s32 %v439, 1
    %v444 = vsel %vm442, %v443, %v439
    %v445 = vadd.s32 %v440, %v444
    %v446 = vadd.s32 %v445, 536870912
    %v447 = vshrl.u32 %v446, 30
    %v448 = vshll.u32 %v447, 30
    %v449 = vsub.s32 %v445, %v448
    %vm450 = vcmp.lt.s32.totalorder %v449, 0
    %v451 = vsub.s32 0, %v449
    %v452 = vsel %vm450, %v451, %v449
    %v453 = vclz %v452
    %v454 = vsub.s32 %v453, 2
    %vm455 = vcmp.gt.s32.totalorder 0, %v454
    %v456 = vsel %vm455, 0, %v454
    %v457 = vsub.s32 32, %v456
    %v458 = vshll.u32 %v449, %v456
    %v459 = vshrl.u32 %v441, %v457
    %v460 = vor.u32 %v458, %v459
    %v461 = vsub.s32 4294967266, %v456
    %v462 = vadd.s32 %v461, 127
    %v463 = vshll.u32 %v462, 23
    %v464 = vor.u32 4788187, %v463
    %v465 = vand.u32 2147483647, %v464
    %v467 = vcvt.s32.f32 %v460
    %v468 = vmul.f32 %v467, %v465
    %v469 = vxor.u32 %v468, 2147483648
    %v470 = vsel %vm387, %v469, %v468
    %v471 = vsub.s32 4, %v447
    %v472 = vsel %vm387, %v471, %v447
    %v473 = vsel %vm386, %v72, %v470
    %v474 = vsel %vm386, 0, %v472
    %v475 = vcosq.f32.pop %v473
    %v476 = vsinq.f32.pop %v473
    %vm477 = vweird.f32 %v72
    %v478 = vadd.s32 %v474, 3
    %v479 = vand.u32 %v478, 3
    %vm480 = vcmp.lt.s32.totalorder %v479, 2
    %vm481 = vcmp.eq.s32.totalorder %v479, 0
    %v482 = vxor.u32 %v476, 2147483648
    %v483 = vsel %vm481, %v475, %v482
    %vm484 = vcmp.eq.s32.totalorder %v479, 2
    %v485 = vxor.u32 %v475, 2147483648
    %v486 = vsel %vm484, %v485, %v476
    %v487 = vsel %vm480, %v483, %v486
    %v488 = vsel %vm477, nan, %v487
    %489 = vst [vmem:[#allocation8] sm:$0xff] %v384
    %490 = vst [vmem:[#allocation8 + $0x8] sm:$0xff] %v488
    // Predicated region
    $region18: #{tpu_custom_call.1} parent=1 // pred_check
      _
    $region19: #{tpu_custom_call.1} parent=1 // pred_check_branch
      %492 = sbr.rel (0) target = $region21
    $region20: #{tpu_custom_call.1} parent=1 // pred_region
      %s494 = ssub.s32 256, 256
      %495 = vsyncadd [#allocation4], %s494
      %s497 = sshll.u32 [#allocation7], 4
      %s498 = int_to_ptr.vmem [resolvable:$true] %s497
      %500 = dma.vmem_to_hbm [thread:$0]  %s498, 256, %s2, [#allocation4]
    $region21: #{tpu_custom_call.1} parent=1 // pred_fallthru
      _
    // Predicated region
    $region22: #{tpu_custom_call.1} parent=1 // pred_check
      _
    $region23: #{tpu_custom_call.1} parent=1 // pred_check_branch
      %502 = sbr.rel (0) target = $region25
    $region24: #{tpu_custom_call.1} parent=1 // pred_region
      %s504 = ssub.s32 256, 256
      %505 = vsyncadd [#allocation9], %s504
      %s507 = sshll.u32 [#allocation8], 4
      %s508 = int_to_ptr.vmem [resolvable:$true] %s507
      %510 = dma.vmem_to_hbm [thread:$0]  %s508, 256, %s3, [#allocation9]
    $region25: #{tpu_custom_call.1} parent=1 // pred_fallthru
      _
    // Predicated region
    $region26: #{tpu_custom_call.1} parent=1 // pred_check
      _
    $region27: #{tpu_custom_call.1} parent=1 // pred_check_branch
      %512 = sbr.rel (0) target = $region29
    $region28: #{tpu_custom_call.1} parent=1 // pred_region
      %513 = dma.done [#allocation4], 256
    $region29: #{tpu_custom_call.1} parent=1 // pred_fallthru
      _
    // Predicated region
    $region30: #{tpu_custom_call.1} parent=1 // pred_check
      _
    $region31: #{tpu_custom_call.1} parent=1 // pred_check_branch
      %515 = sbr.rel (0) target = $region33
    $region32: #{tpu_custom_call.1} parent=1 // pred_region
      %516 = dma.done [#allocation9], 256
    $region33: #{tpu_custom_call.1} parent=1 // pred_fallthru
      _
    %517 = vsyncpa [#allocation3], 1
    %518 = vsyncpa [#allocation6], 1
    %519 = vsyncpa [#allocation4], 1
    %520 = vsyncpa [#allocation9], 1

</llo_original>
